<compile_context>
chip_gen: v6e
topology: v6e:2x2x1
jax: 0.10.0
libtpu: 0.0.40
codegen_flags: <defaults>
</compile_context>

<pallas_src>
import jax
import jax.numpy as jnp
from jax import lax
from jax.experimental import pallas as pl
from jax.experimental.pallas import tpu as pltpu

_EPS = 1e-6
_EPS2 = _EPS * _EPS


def _cosine_loss_kernel(lhs_ref, rhs_ref, acc_ref):
    """Grid = (batch, spatial_blocks). Input blocks: (1, c, tile_n)."""
    ni = pl.program_id(1)

    # Cast per-tile (keeps live intermediates tile-sized on v5e/v6e/v7x).
    l = lhs_ref[...].astype(jnp.float32)          # (1, c, tile_n)
    r = rhs_ref[...].astype(jnp.float32)          # (1, c, tile_n)

    # Fused channel reductions (sublane axis): dot product + squared norms.
    dot = jnp.sum(l * r, axis=1, keepdims=True)   # (1, 1, tile_n)
    sl = jnp.sum(l * l, axis=1, keepdims=True)    # (1, 1, tile_n)
    sr = jnp.sum(r * r, axis=1, keepdims=True)    # (1, 1, tile_n)

    # cos = dot / (max(||l||,eps) * max(||r||,eps)) via one rsqrt (EUP slot).
    cos = dot * lax.rsqrt(jnp.maximum(sl, _EPS2) * jnp.maximum(sr, _EPS2))

    @pl.when(ni == 0)
    def _init():
        acc_ref[...] = jnp.zeros_like(acc_ref)

    acc_ref[...] += cos


def _pick_tile_n(n, c, in_itemsize):
    """Largest spatial tile (multiple of 128 dividing n) whose pipelined VMEM
    footprint (2 inputs x 2 buffers + f32 temporaries) stays around ~8 MiB."""
    if n % 128 != 0 or n <= 128:
        return n  # full spatial extent as a single (valid) block
    per_col = c * (4 * in_itemsize + 4 * 4)
    budget = 8 * 1024 * 1024
    tile = min(n, 2048, max(128, (budget // per_col) // 128 * 128))
    while n % tile:
        tile -= 128
    return tile


def cosine_loss(lhs, rhs):
    assert lhs.shape == rhs.shape and lhs.ndim == 4, "expected NCHW inputs"
    b, c, h, w = lhs.shape
    n = h * w

    # Lane-dense layout: (b, c, h, w) -> (b, c, h*w); contiguous, free reshape.
    lhs2 = lhs.reshape(b, c, n)
    rhs2 = rhs.reshape(b, c, n)

    tile_n = _pick_tile_n(n, c, lhs.dtype.itemsize)
    grid = (b, n // tile_n)

    in_spec = pl.BlockSpec((1, c, tile_n), lambda bi, ni: (bi, 0, ni))
    out_spec = pl.BlockSpec((1, 1, tile_n), lambda bi, ni: (bi, 0, 0))

    partial = pl.pallas_call(
        _cosine_loss_kernel,
        out_shape=jax.ShapeDtypeStruct((b, 1, tile_n), jnp.float32),
        grid=grid,
        in_specs=[in_spec, in_spec],
        out_specs=out_spec,
        compiler_params=pltpu.CompilerParams(
            dimension_semantics=("parallel", "arbitrary"),
            vmem_limit_bytes=32 * 1024 * 1024,
        ),
    )(lhs2, rhs2)

    # Tiny finalize in plain JAX: sum of b*tile_n lane partials -> mean -> loss.
    return 1.0 - jnp.sum(partial) / jnp.float32(b * n)


def _reference(lhs, rhs):
    # Pure-JAX reference matching torch.nn.CosineSimilarity(dim=1, eps=1e-6).
    lhs = lhs.astype(jnp.float32)
    rhs = rhs.astype(jnp.float32)
    dot = jnp.sum(lhs * rhs, axis=1)
    nl = jnp.sqrt(jnp.sum(lhs * lhs, axis=1))
    nr = jnp.sqrt(jnp.sum(rhs * rhs, axis=1))
    cos = dot / (jnp.maximum(nl, _EPS) * jnp.maximum(nr, _EPS))
    return 1.0 - jnp.mean(cos)


if __name__ == "__main__":
    key = jax.random.PRNGKey(0)
    k1, k2 = jax.random.split(key)
    b, c, h, w = 2, 4, 16, 16
    lhs = jax.random.normal(k1, (b, c, h, w), dtype=jnp.float32)
    rhs = jax.random.normal(k2, (b, c, h, w), dtype=jnp.float32)

    out = jax.block_until_ready(cosine_loss(lhs, rhs))
    ref = jax.block_until_ready(_reference(lhs, rhs))

    assert jnp.isfinite(out), "kernel produced non-finite loss"
    assert jnp.allclose(out, ref, rtol=1e-5, atol=1e-5), (out, ref)
    print("KERNEL_OK")
</pallas_src>

<mosaic_0001>
module attributes {stable_mosaic.version = 11 : i64} {
  func.func @_cosine_loss_kernel(%arg0: i32, %arg1: i32, %arg2: memref<1x4x256xf32, #tpu.memory_space<vmem>>, %arg3: memref<1x4x256xf32, #tpu.memory_space<vmem>>, %arg4: memref<1x1x256xf32, #tpu.memory_space<vmem>>) attributes {dimension_semantics = [#tpu.dimension_semantics<parallel>, #tpu.dimension_semantics<arbitrary>], iteration_bounds = array<i64: 2, 1>, scalar_prefetch = 0 : i64, scratch_operands = 0 : i64, tpu.core_type = #tpu.core_type<tc>, window_params = [{transform_indices = @transform_0, window_bounds = array<i64: 1, 4, 256>}, {transform_indices = @transform_1, window_bounds = array<i64: 1, 4, 256>}, {transform_indices = @transform_2, window_bounds = array<i64: 1, 1, 256>}]} {
    %c0 = arith.constant 0 : index
    %c0_0 = arith.constant 0 : index
    %c0_1 = arith.constant 0 : index
    %0 = vector.load %arg2[%c0, %c0_0, %c0_1] : memref<1x4x256xf32, #tpu.memory_space<vmem>>, vector<1x4x256xf32>
    %c0_2 = arith.constant 0 : index
    %c0_3 = arith.constant 0 : index
    %c0_4 = arith.constant 0 : index
    %1 = vector.load %arg3[%c0_2, %c0_3, %c0_4] : memref<1x4x256xf32, #tpu.memory_space<vmem>>, vector<1x4x256xf32>
    %2 = arith.mulf %0, %1 : vector<1x4x256xf32>
    %cst = arith.constant dense<0.000000e+00> : vector<1x256xf32>
    %3 = vector.multi_reduction <add>, %2, %cst [1] : vector<1x4x256xf32> to vector<1x256xf32>
    %4 = vector.shape_cast %3 : vector<1x256xf32> to vector<1x1x256xf32>
    %5 = arith.mulf %0, %0 : vector<1x4x256xf32>
    %cst_5 = arith.constant dense<0.000000e+00> : vector<1x256xf32>
    %6 = vector.multi_reduction <add>, %5, %cst_5 [1] : vector<1x4x256xf32> to vector<1x256xf32>
    %7 = vector.shape_cast %6 : vector<1x256xf32> to vector<1x1x256xf32>
    %8 = arith.mulf %1, %1 : vector<1x4x256xf32>
    %cst_6 = arith.constant dense<0.000000e+00> : vector<1x256xf32>
    %9 = vector.multi_reduction <add>, %8, %cst_6 [1] : vector<1x4x256xf32> to vector<1x256xf32>
    %10 = vector.shape_cast %9 : vector<1x256xf32> to vector<1x1x256xf32>
    %cst_7 = arith.constant 9.99999996E-13 : f32
    %11 = vector.broadcast %cst_7 : f32 to vector<1x1x256xf32>
    %12 = arith.maximumf %7, %11 : vector<1x1x256xf32>
    %cst_8 = arith.constant 9.99999996E-13 : f32
    %13 = vector.broadcast %cst_8 : f32 to vector<1x1x256xf32>
    %14 = arith.maximumf %10, %13 : vector<1x1x256xf32>
    %15 = arith.mulf %12, %14 : vector<1x1x256xf32>
    %16 = math.rsqrt %15 : vector<1x1x256xf32>
    %17 = arith.mulf %4, %16 : vector<1x1x256xf32>
    %c0_i32 = arith.constant 0 : i32
    %18 = arith.cmpi eq, %arg1, %c0_i32 : i32
    %19 = arith.extui %18 : i1 to i32
    %c0_i32_9 = arith.constant 0 : i32
    %20 = arith.cmpi ne, %19, %c0_i32_9 : i32
    scf.if %20 {
      %cst_16 = arith.constant 0.000000e+00 : f32
      %24 = vector.broadcast %cst_16 : f32 to vector<1x1x256xf32>
      %c0_17 = arith.constant 0 : index
      %c0_18 = arith.constant 0 : index
      %c0_19 = arith.constant 0 : index
      %25 = vector.load %arg4[%c0_17, %c0_18, %c0_19] : memref<1x1x256xf32, #tpu.memory_space<vmem>>, vector<1x1x256xf32>
      tpu.vector_store %arg4[%c0_17, %c0_18, %c0_19], %24 {strides = array<i32>} : memref<1x1x256xf32, #tpu.memory_space<vmem>>, vector<1x1x256xf32>,
    } else {
    }
    %c0_10 = arith.constant 0 : index
    %c0_11 = arith.constant 0 : index
    %c0_12 = arith.constant 0 : index
    %21 = vector.load %arg4[%c0_10, %c0_11, %c0_12] : memref<1x1x256xf32, #tpu.memory_space<vmem>>, vector<1x1x256xf32>
    %22 = arith.addf %21, %17 : vector<1x1x256xf32>
    %c0_13 = arith.constant 0 : index
    %c0_14 = arith.constant 0 : index
    %c0_15 = arith.constant 0 : index
    %23 = vector.load %arg4[%c0_13, %c0_14, %c0_15] : memref<1x1x256xf32, #tpu.memory_space<vmem>>, vector<1x1x256xf32>
    tpu.vector_store %arg4[%c0_13, %c0_14, %c0_15], %22 {strides = array<i32>} : memref<1x1x256xf32, #tpu.memory_space<vmem>>, vector<1x1x256xf32>,
    return
  }
  func.func @transform_0(%arg0: i32, %arg1: i32) -> (i32, i32, i32) {
    %c0_i32 = arith.constant 0 : i32
    %c0_i32_0 = arith.constant 0 : i32
    return %arg0, %c0_i32, %arg1 : i32, i32, i32
  }
  func.func @transform_1(%arg0: i32, %arg1: i32) -> (i32, i32, i32) {
    %c0_i32 = arith.constant 0 : i32
    %c0_i32_0 = arith.constant 0 : i32
    return %arg0, %c0_i32, %arg1 : i32, i32, i32
  }
  func.func @transform_2(%arg0: i32, %arg1: i32) -> (i32, i32, i32) {
    %c0_i32 = arith.constant 0 : i32
    %c0_i32_0 = arith.constant 0 : i32
    %c0_i32_1 = arith.constant 0 : i32
    return %arg0, %c0_i32, %c0_i32_0 : i32, i32, i32
  }
}

</mosaic_0001>

<llo_original>
// kernel: tpu_custom_call.1
$region0: #{tpu_custom_call.1}
  #allocation0 [shape = 'u32[]', space=smem, size = 0x4, offset = 0x4, fixed_abs, tag = 'smem constant byte address 0x4 - core index']
  #allocation1 [shape = 'u32[144,128]{1,0:T(1,128)}', space=vmem, size = 0x12000, scoped, tag = 'internal scratch']
  %s0 = inlined_call_operand.hbm [shape: f32[2,4,256], index: 0, kind: input, shape index: {}]
  %s1 = inlined_call_operand.hbm [shape: f32[2,4,256], index: 1, kind: input, shape index: {}]
  %s2 = inlined_call_operand.hbm [shape: f32[2,1,256], index: 2, kind: output, shape index: {}]
  %s3 = sld [smem:[#allocation0]]
  $region53: #{tpu_custom_call.1} parent=0
    _
  %s5 = ssub.s32 1, %s3
  %s6 = scalar_select 0, %s5, %s3
  $region1: #{tpu_custom_call.1} parent=0
    #allocation2 [shape = 'u8[8192]{0}', space=vmem, size = 0x2000, scoped, tag = 'input window, operand 0']
    #allocation3 [shape = 's32[2]{0}', space=sflag, size = 0x8, scoped, tag = 'scoped memory for tpu_custom_call.1']
    #allocation4 [shape = 's32[2]{0}', space=sflag, size = 0x8, scoped, tag = 'scoped memory for tpu_custom_call.1']
    #allocation5 [shape = 'u8[8192]{0}', space=vmem, size = 0x2000, scoped, tag = 'input window, operand 1']
    #allocation6 [shape = 's32[2]{0}', space=sflag, size = 0x8, scoped, tag = 'scoped memory for tpu_custom_call.1']
    #allocation7 [shape = 'u8[2048]{0}', space=vmem, size = 0x800, scoped, tag = 'output window, operand 0']
    %7 = vsyncpa [#allocation3], 0
    %s8 = scalar_lea.sflag [#allocation3], 1
    %9 = vsyncpa %s8, 0
    %10 = vsyncpa [#allocation6], 0
    %s11 = scalar_lea.sflag [#allocation6], 1
    %12 = vsyncpa %s11, 0
    %13 = vsyncpa [#allocation4], 0
    %s14 = scalar_lea.sflag [#allocation4], 1
    %15 = vsyncpa %s14, 0
    loop: start=0, step=1, limit=4
    $region2: #{tpu_custom_call.1} parent=1 // loop_pre_header
      _
    $region3: #{tpu_custom_call.1} parent=1 // loop_header
      %s17 = sphi 0, %s21
      %p18 = scmp.ge.s32.totalorder %s17, 4
      %s24 = sphi 0, %s36
      %s25 = sphi 0, %s32
      %s26 = sphi 0, %s24
      %s27 = sphi 0, %s25
      %s28 = sphi 0, %s26
      %s29 = sphi 0, %s27
      %s41 = sphi 0, %s43
      %s44 = sphi 0, %s41
      %s45 = sphi 0, %s44
      %s61 = sphi 0, %s45
      %s69 = sphi 0, %s71
      %s72 = sphi 0, %s69
      %s73 = sphi 0, %s72
      %s89 = sphi 0, %s73
      %s95 = sphi 0, %s97
      %s98 = sphi 0, %s95
      %s99 = sphi 0, %s98
      %s115 = sphi 0, %s99
    $region4: #{tpu_custom_call.1} parent=1 // loop_header_branch
      %20 = sbr.rel (%p18) target = $region8
    $region5: #{tpu_custom_call.1} parent=1 // loop_body
      %s22 = ssub.s32 %s17, 1
      %s23 = ssub.s32 %s17, 2
      %s30 = sadd.s32 1, %s25
      %p31 = scmp.ge.s32.totalorder %s30, 1
      %s32 = scalar_select %p31, 0, %s30
      %s33 = sadd.s32 1, %s24
      %s34 = scalar_select %p31, %s33, %s24
      %p35 = scmp.ge.s32.totalorder %s34, 2
      %s36 = scalar_select %p35, 0, %s34
      %s37 = ssub.s32 %s24, %s36
      %s38 = ssub.s32 %s25, %s32
      %s39 = sor.u32 %s37, %s38
      %p40 = scmp.eq.s32.totalorder %s39, 0
      %s42 = sadd.s32 %s41, 1
      %s43 = scalar_select %p40, %s41, %s42
      %p46 = pneg %p40
      %p47 = scmp.eq.s32.totalorder %s17, 1
      %p48 = por %p46, %p47
      %p49 = scmp.ne.s32.totalorder %s41, %s44
      %p50 = scmp.eq.s32.totalorder %s17, 0
      %p51 = por %p49, %p50
      %p52 = scmp.ne.s32.totalorder %s41, %s44
      %p53 = scmp.eq.s32.totalorder %s22, 1
      %p54 = por %p52, %p53
      %p55 = scmp.ne.s32.totalorder %s44, %s45
      %p56 = scmp.eq.s32.totalorder %s22, 0
      %p57 = por %p55, %p56
      %p58 = scmp.ne.s32.totalorder %s44, %s45
      %p59 = scmp.eq.s32.totalorder %s23, 1
      %p60 = por %p58, %p59
      %p62 = scmp.ne.s32.totalorder %s45, %s61
      %p63 = scmp.eq.s32.totalorder %s23, 0
      %p64 = por %p62, %p63
      %s65 = ssub.s32 %s24, %s36
      %s66 = ssub.s32 %s25, %s32
      %s67 = sor.u32 %s65, %s66
      %p68 = scmp.eq.s32.totalorder %s67, 0
      %s70 = sadd.s32 %s69, 1
      %s71 = scalar_select %p68, %s69, %s70
      %p74 = pneg %p68
      %p75 = scmp.eq.s32.totalorder %s17, 1
      %p76 = por %p74, %p75
      %p77 = scmp.ne.s32.totalorder %s69, %s72
      %p78 = scmp.eq.s32.totalorder %s17, 0
      %p79 = por %p77, %p78
      %p80 = scmp.ne.s32.totalorder %s69, %s72
      %p81 = scmp.eq.s32.totalorder %s22, 1
      %p82 = por %p80, %p81
      %p83 = scmp.ne.s32.totalorder %s72, %s73
      %p84 = scmp.eq.s32.totalorder %s22, 0
      %p85 = por %p83, %p84
      %p86 = scmp.ne.s32.totalorder %s72, %s73
      %p87 = scmp.eq.s32.totalorder %s23, 1
      %p88 = por %p86, %p87
      %p90 = scmp.ne.s32.totalorder %s73, %s89
      %p91 = scmp.eq.s32.totalorder %s23, 0
      %p92 = por %p90, %p91
      %s93 = ssub.s32 %s24, %s36
      %p94 = scmp.eq.s32.totalorder %s93, 0
      %s96 = sadd.s32 %s95, 1
      %s97 = scalar_select %p94, %s95, %s96
      %p100 = pneg %p94
      %p101 = scmp.eq.s32.totalorder %s17, 1
      %p102 = por %p100, %p101
      %p103 = scmp.ne.s32.totalorder %s95, %s98
      %p104 = scmp.eq.s32.totalorder %s17, 0
      %p105 = por %p103, %p104
      %p106 = scmp.ne.s32.totalorder %s95, %s98
      %p107 = scmp.eq.s32.totalorder %s22, 1
      %p108 = por %p106, %p107
      %p109 = scmp.ne.s32.totalorder %s98, %s99
      %p110 = scmp.eq.s32.totalorder %s22, 0
      %p111 = por %p109, %p110
      %p112 = scmp.ne.s32.totalorder %s98, %s99
      %p113 = scmp.eq.s32.totalorder %s23, 1
      %p114 = por %p112, %p113
      %p116 = scmp.ne.s32.totalorder %s99, %s115
      %p117 = scmp.eq.s32.totalorder %s23, 0
      %p118 = por %p116, %p117
      %p119 = scmp.le.s32.totalorder 1, %s17
      %p120 = scmp.lt.s32.totalorder %s17, 3
      %p121 = pnand %p119, %p120
      %p122 = pneg %p121
      // Predicated region
      $region9: #{tpu_custom_call.1} parent=5 // pred_check
        _
      $region10: #{tpu_custom_call.1} parent=5 // pred_check_branch
        %124 = sbr.rel (%p121) target = $region12
      $region11: #{tpu_custom_call.1} parent=5 // pred_region
        %s125 = ssub.s32 %s17, 1
      $region12: #{tpu_custom_call.1} parent=5 // pred_fallthru
        _
      %p126 = scmp.lt.s32.totalorder %s17, 2
      // Predicated region
      $region13: #{tpu_custom_call.1} parent=5 // pred_check
        %p127 = pneg %p126
      $region14: #{tpu_custom_call.1} parent=5 // pred_check_branch
        %129 = sbr.rel (%p127) target = $region16
      $region15: #{tpu_custom_call.1} parent=5 // pred_region
        // Predicated region
        $region17: #{tpu_custom_call.1} parent=15 // pred_check
          %p130 = pneg %p51
        $region18: #{tpu_custom_call.1} parent=15 // pred_check_branch
          %132 = sbr.rel (%p130) target = $region20
        $region19: #{tpu_custom_call.1} parent=15 // pred_region
          %s133 = sand.u32 %s41, 1
          %s134 = scalar_lea.sflag [#allocation3], %s133
          %s135 = sand.u32 %s41, 1
          %s136 = smul.addr %s135, 8
          %s137 = scalar_lea.vmem [#allocation2], %s136
          %s138 = smul.u32 2, %s25
          %s140 = ssub.s32 128, 128
          %141 = vsyncadd %s134, %s140
          %s142 = smul.addr %s24, 2
          %s143 = sadd.s32 %s138, %s142
          %s144 = smul.addr %s143, 64
          %s145 = scalar_lea.hbm %s0, %s144
          %s147 = sshll.u32 %s137, 4
          %s148 = int_to_ptr.vmem [resolvable:$true] %s147
          %150 = dma.hbm_to_vmem [thread:$0]  %s145, 128, %s148, %s134
        $region20: #{tpu_custom_call.1} parent=15 // pred_fallthru
          _
        // Predicated region
        $region21: #{tpu_custom_call.1} parent=15 // pred_check
          %p151 = pneg %p79
        $region22: #{tpu_custom_call.1} parent=15 // pred_check_branch
          %153 = sbr.rel (%p151) target = $region24
        $region23: #{tpu_custom_call.1} parent=15 // pred_region
          %s154 = sand.u32 %s69, 1
          %s155 = scalar_lea.sflag [#allocation6], %s154
          %s156 = sand.u32 %s69, 1
          %s157 = smul.addr %s156, 8
          %s158 = scalar_lea.vmem [#allocation5], %s157
          %s159 = smul.u32 2, %s25
          %s161 = ssub.s32 128, 128
          %162 = vsyncadd %s155, %s161
          %s163 = smul.addr %s24, 2
          %s164 = sadd.s32 %s159, %s163
          %s165 = smul.addr %s164, 64
          %s166 = scalar_lea.hbm %s1, %s165
          %s168 = sshll.u32 %s158, 4
          %s169 = int_to_ptr.vmem [resolvable:$true] %s168
          %171 = dma.hbm_to_vmem [thread:$0]  %s166, 128, %s169, %s155
        $region24: #{tpu_custom_call.1} parent=15 // pred_fallthru
          _
      $region16: #{tpu_custom_call.1} parent=5 // pred_fallthru
        _
      %p172 = scmp.le.s32.totalorder 1, %s17
      %p173 = scmp.lt.s32.totalorder %s17, 3
      %p174 = pnand %p172, %p173
      %p175 = pneg %p174
      // Predicated region
      $region25: #{tpu_custom_call.1} parent=5 // pred_check
        _
      $region26: #{tpu_custom_call.1} parent=5 // pred_check_branch
        %177 = sbr.rel (%p174) target = $region28
      $region27: #{tpu_custom_call.1} parent=5 // pred_region
        %s178 = ssub.s32 %s17, 1
        %s179 = sand.u32 %s44, 1
        %s180 = scalar_lea.sflag [#allocation3], %s179
        %s181 = sand.u32 %s44, 1
        %s182 = smul.addr %s181, 8
        %s183 = scalar_lea.vmem [#allocation2], %s182
        // Predicated region
        $region29: #{tpu_custom_call.1} parent=27 // pred_check
          %p184 = pneg %p57
        $region30: #{tpu_custom_call.1} parent=27 // pred_check_branch
          %186 = sbr.rel (%p184) target = $region32
        $region31: #{tpu_custom_call.1} parent=27 // pred_region
          %187 = dma.done %s180, 128
        $region32: #{tpu_custom_call.1} parent=27 // pred_fallthru
          _
        %s188 = sand.u32 %s72, 1
        %s189 = scalar_lea.sflag [#allocation6], %s188
        %s190 = sand.u32 %s72, 1
        %s191 = smul.addr %s190, 8
        %s192 = scalar_lea.vmem [#allocation5], %s191
        // Predicated region
        $region33: #{tpu_custom_call.1} parent=27 // pred_check
          %p193 = pneg %p85
        $region34: #{tpu_custom_call.1} parent=27 // pred_check_branch
          %195 = sbr.rel (%p193) target = $region36
        $region35: #{tpu_custom_call.1} parent=27 // pred_region
          %196 = dma.done %s189, 128
        $region36: #{tpu_custom_call.1} parent=27 // pred_fallthru
          _
        %s197 = sand.u32 %s44, 1
        %s198 = scalar_lea.sflag [#allocation3], %s197
        %s199 = sand.u32 %s44, 1
        %s200 = smul.addr %s199, 8
        %s201 = scalar_lea.vmem [#allocation2], %s200
        %p202 = pneg %p57
        %p203 = pneg %p54
        %s204 = sand.u32 %s72, 1
        %s205 = scalar_lea.sflag [#allocation6], %s204
        %s206 = sand.u32 %s72, 1
        %s207 = smul.addr %s206, 8
        %s208 = scalar_lea.vmem [#allocation5], %s207
        %p209 = pneg %p85
        %p210 = pneg %p82
        %p211 = pneg %p111
        %p212 = pneg %p108
        %s213 = sand.u32 %s98, 1
        %s214 = scalar_lea.sflag [#allocation4], %s213
        %s215 = sand.u32 %s98, 1
        %s216 = smul.addr %s215, 2
        %s217 = scalar_lea.vmem [#allocation7], %s216
        %s218 = smul.u32 2, %s27
        %s219 = smul.u32 2, %s27
        %v220 = vld [vmem:[%s183] sm:$0xff]
        %v221 = vld [vmem:[%s192] sm:$0xff]
        %v222 = vmul.f32 %v220, %v221
        %v224 = vcombine.high %v222, %v222
        %vm226 = vcmask 1043456
        %v227 = vsel %vm226, %v222, 0.0
        %v228 = vrot.slane %v227, 4
        %v229 = vadd.f32 %v227, %v228
        %v230 = vrot.slane %v229, 2
        %v231 = vadd.f32 %v229, %v230
        %v232 = vrot.slane %v231, 1
        %v233 = vadd.f32 %v231, %v232
        %v234 = vsel %vm226, %v224, 0.0
        %v235 = vrot.slane %v234, 4
        %v236 = vadd.f32 %v234, %v235
        %v237 = vrot.slane %v236, 2
        %v238 = vadd.f32 %v236, %v237
        %v239 = vrot.slane %v238, 1
        %v240 = vadd.f32 %v238, %v239
        %v241 = vmul.f32 %v220, %v220
        %v243 = vcombine.high %v241, %v241
        %v245 = vsel %vm226, %v241, 0.0
        %v246 = vrot.slane %v245, 4
        %v247 = vadd.f32 %v245, %v246
        %v248 = vrot.slane %v247, 2
        %v249 = vadd.f32 %v247, %v248
        %v250 = vrot.slane %v249, 1
        %v251 = vadd.f32 %v249, %v250
        %v252 = vsel %vm226, %v243, 0.0
        %v253 = vrot.slane %v252, 4
        %v254 = vadd.f32 %v252, %v253
        %v255 = vrot.slane %v254, 2
        %v256 = vadd.f32 %v254, %v255
        %v257 = vrot.slane %v256, 1
        %v258 = vadd.f32 %v256, %v257
        %v259 = vmul.f32 %v221, %v221
        %v261 = vcombine.high %v259, %v259
        %v263 = vsel %vm226, %v259, 0.0
        %v264 = vrot.slane %v263, 4
        %v265 = vadd.f32 %v263, %v264
        %v266 = vrot.slane %v265, 2
        %v267 = vadd.f32 %v265, %v266
        %v268 = vrot.slane %v267, 1
        %v269 = vadd.f32 %v267, %v268
        %v270 = vsel %vm226, %v261, 0.0
        %v271 = vrot.slane %v270, 4
        %v272 = vadd.f32 %v270, %v271
        %v273 = vrot.slane %v272, 2
        %v274 = vadd.f32 %v272, %v273
        %v275 = vrot.slane %v274, 1
        %v276 = vadd.f32 %v274, %v275
        %v277 = vmax.f32 %v251, 1e-12
        %v278 = vmax.f32 %v258, 1e-12
        %v279 = vmax.f32 %v269, 1e-12
        %v280 = vmax.f32 %v276, 1e-12
        %v281 = vmul.f32 %v277, %v279
        %v282 = vmul.f32 %v278, %v280
        %v283 = vrsqrt.pop %v281
        %v284 = vrsqrt.pop %v282
        %v285 = vmul.f32 %v233, %v283
        %v286 = vmul.f32 %v240, %v284
        %p287 = scmp.eq.s32.totalorder %s27, 0
        // Predicated region
        $region37: #{tpu_custom_call.1} parent=27 // pred_check
          %p288 = pneg %p287
        $region38: #{tpu_custom_call.1} parent=27 // pred_check_branch
          %290 = sbr.rel (%p288) target = $region40
        $region39: #{tpu_custom_call.1} parent=27 // pred_region
          %v291 = vlaneseq
          %vm292 = vcmp.ge.s32.totalorder %v291, 0
          %vm293 = vcmp.lt.s32.totalorder %v291, 256
          %vm294 = vmand %vm292, %vm293
          %295 = vst.msk [vmem:[%s217] sm:$0x3] %vm294, 0.0
        $region40: #{tpu_custom_call.1} parent=27 // pred_fallthru
          _
        %v296 = vld [vmem:[%s217] sm:$0x3]
        %v299 = vcombine.low %v285, %v286
        %v301 = vunpack.c.l.s4 1966171168
        %v302 = vunpack.c.0.s8 %v301
        %v303 = vlaneseq
        %v304 = vshrl.u32 %v303, 7
        %v305 = vsub.s32 %v302, %v304
        %v306 = vrot.slane %v299, %v305
        %v308 = vunpack.c.l.s4 1966171168
        %v309 = vunpack.c.0.s8 %v308
        %v310 = vlaneseq
        %v311 = vshrl.u32 %v310, 7
        %v312 = vsub.s32 %v309, %v311
        %v313 = vrot.slane %v306, %v312
        %v315 = vadd.f32 %v296, %v313
        %v316 = vlaneseq
        %vm317 = vcmp.ge.s32.totalorder %v316, 0
        %vm318 = vcmp.lt.s32.totalorder %v316, 256
        %vm319 = vmand %vm317, %vm318
        %320 = vst.msk [vmem:[%s217] sm:$0x3] %vm319, %v315
        %s321 = sand.u32 %s98, 1
        %s322 = scalar_lea.sflag [#allocation4], %s321
        %s323 = sand.u32 %s98, 1
        %s324 = smul.addr %s323, 2
        %s325 = scalar_lea.vmem [#allocation7], %s324
        // Predicated region
        $region41: #{tpu_custom_call.1} parent=27 // pred_check
          %p326 = pneg %p108
        $region42: #{tpu_custom_call.1} parent=27 // pred_check_branch
          %328 = sbr.rel (%p326) target = $region44
        $region43: #{tpu_custom_call.1} parent=27 // pred_region
          %s330 = ssub.s32 32, 32
          %331 = vsyncadd %s322, %s330
          %s332 = smul.addr %s26, 2
          %s333 = smul.addr %s332, 16
          %s334 = scalar_lea.hbm %s2, %s333
          %s336 = sshll.u32 %s325, 4
          %s337 = int_to_ptr.vmem [resolvable:$true] %s336
          %339 = dma.vmem_to_hbm [thread:$0]  %s337, 32, %s334, %s322
        $region44: #{tpu_custom_call.1} parent=27 // pred_fallthru
          _
      $region28: #{tpu_custom_call.1} parent=5 // pred_fallthru
        _
      %p340 = scmp.le.s32.totalorder 2, %s17
      // Predicated region
      $region45: #{tpu_custom_call.1} parent=5 // pred_check
        %p341 = pneg %p340
      $region46: #{tpu_custom_call.1} parent=5 // pred_check_branch
        %343 = sbr.rel (%p341) target = $region48
      $region47: #{tpu_custom_call.1} parent=5 // pred_region
        %s344 = ssub.s32 %s17, 2
        // Predicated region
        $region49: #{tpu_custom_call.1} parent=47 // pred_check
          %p345 = pneg %p114
        $region50: #{tpu_custom_call.1} parent=47 // pred_check_branch
          %347 = sbr.rel (%p345) target = $region52
        $region51: #{tpu_custom_call.1} parent=47 // pred_region
          %s348 = sand.u32 %s99, 1
          %s349 = scalar_lea.sflag [#allocation4], %s348
          %s350 = sand.u32 %s99, 1
          %s351 = smul.addr %s350, 2
          %s352 = scalar_lea.vmem [#allocation7], %s351
          %353 = dma.done %s349, 32
        $region52: #{tpu_custom_call.1} parent=47 // pred_fallthru
          _
      $region48: #{tpu_custom_call.1} parent=5 // pred_fallthru
        _
    $region6: #{tpu_custom_call.1} parent=1 // loop_footer
      %s21 = sadd.s32 1, %s17
    $region7: #{tpu_custom_call.1} parent=1 // loop_footer_branch
      %16 = sbr.rel target = $region3
    $region8: #{tpu_custom_call.1} parent=1 // loop_exit
      _
    %354 = vsyncpa [#allocation3], 1
    %s355 = scalar_lea.sflag [#allocation3], 1
    %356 = vsyncpa %s355, 1
    %357 = vsyncpa [#allocation6], 1
    %s358 = scalar_lea.sflag [#allocation6], 1
    %359 = vsyncpa %s358, 1
    %360 = vsyncpa [#allocation4], 1
    %s361 = scalar_lea.sflag [#allocation4], 1
    %362 = vsyncpa %s361, 1

</llo_original>
